<compile_context>
chip_gen: v5e
topology: v5e:2x2
jax: 0.10.0
libtpu: 0.0.40
codegen_flags: <defaults>
</compile_context>

<pallas_src>
import functools

import jax
import jax.numpy as jnp
import numpy as np
from jax.experimental import pallas as pl
from jax.experimental.pallas import tpu as pltpu


_K = 5
_PAD = _K // 2          # 2
_HALO = 2 * _PAD        # 4
_OC = 3                 # SRM bank has 3 fixed output filters

# Fixed SRM filters — identical values to SRMConv2d_simple._build_kernel.
_F1 = np.array([[0, 0, 0, 0, 0],
                [0, -1, 2, -1, 0],
                [0, 2, -4, 2, 0],
                [0, -1, 2, -1, 0],
                [0, 0, 0, 0, 0]], dtype=np.float64) / 4.0
_F2 = np.array([[-1, 2, -2, 2, -1],
                [2, -6, 8, -6, 2],
                [-2, 8, -12, 8, -2],
                [2, -6, 8, -6, 2],
                [-1, 2, -2, 2, -1]], dtype=np.float64) / 12.0
_F3 = np.array([[0, 0, 0, 0, 0],
                [0, 0, 0, 0, 0],
                [0, 1, -2, 1, 0],
                [0, 0, 0, 0, 0],
                [0, 0, 0, 0, 0]], dtype=np.float64) / 2.0
_SRM_FILTERS = (_F1, _F2, _F3)


def _srm_kernel(x_ref, out_ref, xpad_ref, *, C, H, W, nb):
    """One grid step: nb images, packed along the lane (last) axis.

    x_ref:    (nb, C, H, W)          raw input block (native dtype) in VMEM
    out_ref:  (1, OC, H, nb*slot)    packed f32 output; image i at cols [i*slot, i*slot+W)
    xpad_ref: (H+4, nb*slot + 4)     scratch: packed, zero-padded, channel-summed plane
    """
    slot = W + _HALO
    Lp = nb * slot
    Hp = H + _HALO

    # ---- channel sum: the SRM bank repeats one 5x5 filter across all input
    # channels, so the conv factorizes through sum_c x[:, c]. The input stays
    # in its native dtype until here (no wrapper-side upcast pass).
    xsum = x_ref[:, 0, :, :].astype(jnp.float32)
    for c in range(1, C):
        xsum = xsum + x_ref[:, c, :, :].astype(jnp.float32)      # (nb, H, W)

    # ---- pack nb images into the padded scratch along the lane axis.
    # Only the halo borders are zeroed; the interior is written exactly once.
    zrow = jnp.zeros((_PAD, Lp + _HALO), jnp.float32)
    zgut = jnp.zeros((H, _PAD), jnp.float32)
    xpad_ref[0:_PAD, :] = zrow                                     # top halo rows
    xpad_ref[_PAD + H:, :] = zrow                                  # bottom halo rows
    xpad_ref[_PAD:_PAD + H, Lp:] = jnp.zeros((H, _HALO), jnp.float32)  # tail cols (hygiene)
    for i in range(nb):
        base = i * slot
        xpad_ref[_PAD:_PAD + H, base:base + _PAD] = zgut                 # left gutter
        xpad_ref[_PAD:_PAD + H, base + _PAD:base + _PAD + W] = xsum[i]   # image i data
        xpad_ref[_PAD:_PAD + H, base + _PAD + W:base + slot] = zgut      # right gutter

    # ---- horizontal (lane-axis) row convolutions. Each of the 5 shifted
    # windows is read once and feeds all three row accumulators
    # (scales 1/4 and 1/12 folded into the horizontal coefficients):
    #   r1 <- h1/4  = [ 0, -1,  2, -1,  0]/4
    #   ra <- hA/12 = [-1,  2, -2,  2, -1]/12
    #   rb <- hB/12 = [ 2, -6,  8, -6,  2]/12
    w0 = xpad_ref[:, 0:Lp]
    w1 = xpad_ref[:, 1:1 + Lp]
    w2 = xpad_ref[:, 2:2 + Lp]
    w3 = xpad_ref[:, 3:3 + Lp]
    w4 = xpad_ref[:, 4:4 + Lp]
    s04 = w0 + w4
    s13 = w1 + w3
    r1 = 0.5 * w2 - 0.25 * s13
    ra = (2.0 * (s13 - w2) - s04) * (1.0 / 12.0)
    rb = (8.0 * w2 - 6.0 * s13 + 2.0 * s04) * (1.0 / 12.0)

    # ---- vertical (sublane-axis) combines + Hardtanh(-3, 3), stored lane-dense.
    #   F1 = v1 x (h1/4),  v1 = [0, 1, -2, 1, 0]
    #   F2 = vA x (hA/12) + v1 x (hB/12),  vA = [1, 0, -2, 0, 1]
    #   F3 = d2 x (-4 * h1/4)  (center row only)
    r1c = r1[_PAD:_PAD + H]
    o1 = r1[1:1 + H] - 2.0 * r1c + r1[3:3 + H]
    o2 = (ra[0:H] - 2.0 * ra[_PAD:_PAD + H] + ra[4:4 + H]
          + rb[1:1 + H] - 2.0 * rb[_PAD:_PAD + H] + rb[3:3 + H])
    o3 = -2.0 * r1c
    out_ref[0, 0, :, :] = jnp.clip(o1, -3.0, 3.0).astype(out_ref.dtype)
    out_ref[0, 1, :, :] = jnp.clip(o2, -3.0, 3.0).astype(out_ref.dtype)
    out_ref[0, 2, :, :] = jnp.clip(o3, -3.0, 3.0).astype(out_ref.dtype)


def srm_conv2d_simple(x: jnp.ndarray) -> jnp.ndarray:
    """SRMConv2d_simple.forward: conv2d(SRM bank, stride=1, pad=2) + Hardtanh(-3, 3).

    x: (B, C, H, W) -> (B, 3, H, W) float32
    """
    B, C, H, W = x.shape
    slot = W + _HALO
    Hp = H + _HALO
    xbytes = jnp.dtype(x.dtype).itemsize

    # Generation-aware VMEM capacity (v7x: 64 MiB/TC, v5e/v6e: 128 MiB).
    try:
        vmem_cap = int(pltpu.get_tpu_info().vmem_capacity_bytes)
    except Exception:
        vmem_cap = 64 * 1024 * 1024
    budget = min(40 * 1024 * 1024, vmem_cap // 2)

    # Per-image VMEM footprint of one grid step: double-buffered input/output
    # blocks, the padded packed scratch, and the kernel's value temporaries
    # (live shifted window + 3 row-conv planes + 3 pre-clip output planes +
    # the channel-summed block).
    per_img = (2 * C * H * W * xbytes          # input block (x2 pipeline buffers)
               + 2 * _OC * H * slot * 4        # output block (x2 pipeline buffers)
               + Hp * slot * 4                 # packed padded scratch
               + 4 * Hp * slot * 4             # window + r1/ra/rb temporaries
               + 3 * H * slot * 4              # pre-clip output planes
               + H * W * 4)                    # channel-summed block
    nb_budget = max(1, budget // int(per_img * 1.25))

    # Keep the grid at >=2 (ideally >=4) steps so the batch axis can shard
    # across TensorCores on multi-core chips (v7x megacore).
    desired_steps = max(1, min(B, 4))
    nb_cap = max(1, B // desired_steps)

    nb = int(max(1, min(B, nb_budget, nb_cap)))
    while B % nb:
        nb -= 1
    # TODO(synk): for single images whose footprint exceeds the VMEM budget
    # (per_img > budget), add an H-axis grid dimension with a 2*_PAD-row halo
    # (manual DMA of the halo rows) instead of one whole-image block.

    nblk = B // nb
    Lp = nb * slot

    kern = functools.partial(_srm_kernel, C=C, H=H, W=W, nb=nb)

    cost = pl.CostEstimate(
        flops=int(B * H * W * ((C - 1) + 40)),
        transcendentals=0,
        bytes_accessed=int(B * C * H * W * xbytes + nblk * _OC * H * Lp * 4))

    vmem_need = int(nb * per_img * 1.5) + (1 << 20)
    vmem_limit = int(min(vmem_cap * 3 // 4, max(32 * 1024 * 1024, vmem_need)))

    out_p = pl.pallas_call(
        kern,
        out_shape=jax.ShapeDtypeStruct((nblk, _OC, H, Lp), jnp.float32),
        grid=(nblk,),
        in_specs=[pl.BlockSpec((nb, C, H, W), lambda b: (b, 0, 0, 0))],
        out_specs=pl.BlockSpec((1, _OC, H, Lp), lambda b: (b, 0, 0, 0)),
        scratch_shapes=[pltpu.VMEM((Hp, Lp + _HALO), jnp.float32)],
        compiler_params=pltpu.CompilerParams(
            dimension_semantics=("parallel",),
            vmem_limit_bytes=vmem_limit),
        cost_estimate=cost,
    )(x)

    # Unpack the lane-packed output: image i of block b sits at columns
    # [i*slot, i*slot + W). Pure layout plumbing (reshape / slice / transpose).
    out = out_p.reshape(nblk, _OC, H, nb, slot)[..., :W]
    out = jnp.transpose(out, (0, 3, 1, 2, 4)).reshape(B, _OC, H, W)
    return out


def _reference_np(x: np.ndarray) -> np.ndarray:
    """Pure-NumPy float64 reference: per-channel conv2d(pad=2) + Hardtanh(-3, 3)."""
    x = np.asarray(x, np.float64)
    B, C, H, W = x.shape
    xp = np.zeros((B, C, H + _HALO, W + _HALO), np.float64)
    xp[:, :, _PAD:_PAD + H, _PAD:_PAD + W] = x
    out = np.zeros((B, _OC, H, W), np.float64)
    for oc, f in enumerate(_SRM_FILTERS):
        acc = np.zeros((B, H, W), np.float64)
        for c in range(C):
            for kh in range(_K):
                for kw in range(_K):
                    if f[kh, kw] != 0.0:
                        acc += f[kh, kw] * xp[:, c, kh:kh + H, kw:kw + W]
        out[:, oc] = np.clip(acc, -3.0, 3.0)
    return out


if __name__ == "__main__":
    B, C, H, W = 2, 3, 16, 16
    key = jax.random.PRNGKey(0)
    x = jax.random.normal(key, (B, C, H, W), dtype=jnp.float32)

    out = jax.block_until_ready(srm_conv2d_simple(x))

    ref = _reference_np(np.asarray(x))
    assert out.shape == (B, _OC, H, W)
    np.testing.assert_allclose(np.asarray(out), ref, rtol=1e-4, atol=1e-4)
    print("KERNEL_OK")
</pallas_src>

<mosaic_0001>
module attributes {stable_mosaic.version = 11 : i64} {
  func.func @_srm_kernel(%arg0: i32, %arg1: memref<1x3x16x16xf32, #tpu.memory_space<vmem>>, %arg2: memref<1x3x16x20xf32, #tpu.memory_space<vmem>>, %arg3: memref<20x24xf32, #tpu.memory_space<vmem>>) attributes {dimension_semantics = [#tpu.dimension_semantics<parallel>], iteration_bounds = array<i64: 2>, scalar_prefetch = 0 : i64, scratch_operands = 1 : i64, tpu.core_type = #tpu.core_type<tc>, window_params = [{transform_indices = @transform_0, window_bounds = array<i64: 1, 3, 16, 16>}, {transform_indices = @transform_1, window_bounds = array<i64: 1, 3, 16, 20>}]} {
    %c0 = arith.constant 0 : index
    %c0_0 = arith.constant 0 : index
    %c0_1 = arith.constant 0 : index
    %c0_2 = arith.constant 0 : index
    %0 = vector.load %arg1[%c0, %c0_0, %c0_1, %c0_2] : memref<1x3x16x16xf32, #tpu.memory_space<vmem>>, vector<1x1x16x16xf32>
    %1 = vector.shape_cast %0 : vector<1x1x16x16xf32> to vector<1x16x16xf32>
    %c0_3 = arith.constant 0 : index
    %c1 = arith.constant 1 : index
    %c0_4 = arith.constant 0 : index
    %c0_5 = arith.constant 0 : index
    %2 = vector.load %arg1[%c0_3, %c1, %c0_4, %c0_5] : memref<1x3x16x16xf32, #tpu.memory_space<vmem>>, vector<1x1x16x16xf32>
    %3 = vector.shape_cast %2 : vector<1x1x16x16xf32> to vector<1x16x16xf32>
    %4 = arith.addf %1, %3 : vector<1x16x16xf32>
    %c0_6 = arith.constant 0 : index
    %c2 = arith.constant 2 : index
    %c0_7 = arith.constant 0 : index
    %c0_8 = arith.constant 0 : index
    %5 = vector.load %arg1[%c0_6, %c2, %c0_7, %c0_8] : memref<1x3x16x16xf32, #tpu.memory_space<vmem>>, vector<1x1x16x16xf32>
    %6 = vector.shape_cast %5 : vector<1x1x16x16xf32> to vector<1x16x16xf32>
    %7 = arith.addf %4, %6 : vector<1x16x16xf32>
    %cst = arith.constant 0.000000e+00 : f32
    %8 = vector.broadcast %cst : f32 to vector<2x24xf32>
    %cst_9 = arith.constant 0.000000e+00 : f32
    %9 = vector.broadcast %cst_9 : f32 to vector<16x2xf32>
    %c0_10 = arith.constant 0 : index
    %c0_11 = arith.constant 0 : index
    %10 = vector.load %arg3[%c0_10, %c0_11] : memref<20x24xf32, #tpu.memory_space<vmem>>, vector<2x24xf32>
    tpu.vector_store %arg3[%c0_10, %c0_11], %8 {strides = array<i32>} : memref<20x24xf32, #tpu.memory_space<vmem>>, vector<2x24xf32>,
    %c18 = arith.constant 18 : index
    %c0_12 = arith.constant 0 : index
    %11 = vector.load %arg3[%c18, %c0_12] : memref<20x24xf32, #tpu.memory_space<vmem>>, vector<2x24xf32>
    tpu.vector_store %arg3[%c18, %c0_12], %8 {strides = array<i32>} : memref<20x24xf32, #tpu.memory_space<vmem>>, vector<2x24xf32>,
    %cst_13 = arith.constant 0.000000e+00 : f32
    %12 = vector.broadcast %cst_13 : f32 to vector<16x4xf32>
    %c2_14 = arith.constant 2 : index
    %c20 = arith.constant 20 : index
    %13 = vector.load %arg3[%c2_14, %c20] : memref<20x24xf32, #tpu.memory_space<vmem>>, vector<16x4xf32>
    tpu.vector_store %arg3[%c2_14, %c20], %12 {strides = array<i32>} : memref<20x24xf32, #tpu.memory_space<vmem>>, vector<16x4xf32>,
    %c2_15 = arith.constant 2 : index
    %c0_16 = arith.constant 0 : index
    %14 = vector.load %arg3[%c2_15, %c0_16] : memref<20x24xf32, #tpu.memory_space<vmem>>, vector<16x2xf32>
    tpu.vector_store %arg3[%c2_15, %c0_16], %9 {strides = array<i32>} : memref<20x24xf32, #tpu.memory_space<vmem>>, vector<16x2xf32>,
    %15 = vector.shape_cast %7 : vector<1x16x16xf32> to vector<16x16xf32>
    %c2_17 = arith.constant 2 : index
    %c2_18 = arith.constant 2 : index
    %16 = vector.load %arg3[%c2_17, %c2_18] : memref<20x24xf32, #tpu.memory_space<vmem>>, vector<16x16xf32>
    tpu.vector_store %arg3[%c2_17, %c2_18], %15 {strides = array<i32>} : memref<20x24xf32, #tpu.memory_space<vmem>>, vector<16x16xf32>,
    %c2_19 = arith.constant 2 : index
    %c18_20 = arith.constant 18 : index
    %17 = vector.load %arg3[%c2_19, %c18_20] : memref<20x24xf32, #tpu.memory_space<vmem>>, vector<16x2xf32>
    tpu.vector_store %arg3[%c2_19, %c18_20], %9 {strides = array<i32>} : memref<20x24xf32, #tpu.memory_space<vmem>>, vector<16x2xf32>,
    %c0_21 = arith.constant 0 : index
    %c0_22 = arith.constant 0 : index
    %18 = vector.load %arg3[%c0_21, %c0_22] : memref<20x24xf32, #tpu.memory_space<vmem>>, vector<20x20xf32>
    %c0_23 = arith.constant 0 : index
    %c1_24 = arith.constant 1 : index
    %19 = vector.load %arg3[%c0_23, %c1_24] : memref<20x24xf32, #tpu.memory_space<vmem>>, vector<20x20xf32>
    %c0_25 = arith.constant 0 : index
    %c2_26 = arith.constant 2 : index
    %20 = vector.load %arg3[%c0_25, %c2_26] : memref<20x24xf32, #tpu.memory_space<vmem>>, vector<20x20xf32>
    %c0_27 = arith.constant 0 : index
    %c3 = arith.constant 3 : index
    %21 = vector.load %arg3[%c0_27, %c3] : memref<20x24xf32, #tpu.memory_space<vmem>>, vector<20x20xf32>
    %c0_28 = arith.constant 0 : index
    %c4 = arith.constant 4 : index
    %22 = vector.load %arg3[%c0_28, %c4] : memref<20x24xf32, #tpu.memory_space<vmem>>, vector<20x20xf32>
    %23 = arith.addf %18, %22 : vector<20x20xf32>
    %24 = arith.addf %19, %21 : vector<20x20xf32>
    %cst_29 = arith.constant 5.000000e-01 : f32
    %25 = vector.broadcast %cst_29 : f32 to vector<20x20xf32>
    %26 = arith.mulf %25, %20 : vector<20x20xf32>
    %cst_30 = arith.constant 2.500000e-01 : f32
    %27 = vector.broadcast %cst_30 : f32 to vector<20x20xf32>
    %28 = arith.mulf %27, %24 : vector<20x20xf32>
    %29 = arith.subf %26, %28 : vector<20x20xf32>
    %30 = arith.subf %24, %20 : vector<20x20xf32>
    %cst_31 = arith.constant 2.000000e+00 : f32
    %31 = vector.broadcast %cst_31 : f32 to vector<20x20xf32>
    %32 = arith.mulf %31, %30 : vector<20x20xf32>
    %33 = arith.subf %32, %23 : vector<20x20xf32>
    %cst_32 = arith.constant 0.0833333358 : f32
    %34 = vector.broadcast %cst_32 : f32 to vector<20x20xf32>
    %35 = arith.mulf %33, %34 : vector<20x20xf32>
    %cst_33 = arith.constant 8.000000e+00 : f32
    %36 = vector.broadcast %cst_33 : f32 to vector<20x20xf32>
    %37 = arith.mulf %36, %20 : vector<20x20xf32>
    %cst_34 = arith.constant 6.000000e+00 : f32
    %38 = vector.broadcast %cst_34 : f32 to vector<20x20xf32>
    %39 = arith.mulf %38, %24 : vector<20x20xf32>
    %40 = arith.subf %37, %39 : vector<20x20xf32>
    %cst_35 = arith.constant 2.000000e+00 : f32
    %41 = vector.broadcast %cst_35 : f32 to vector<20x20xf32>
    %42 = arith.mulf %41, %23 : vector<20x20xf32>
    %43 = arith.addf %40, %42 : vector<20x20xf32>
    %cst_36 = arith.constant 0.0833333358 : f32
    %44 = vector.broadcast %cst_36 : f32 to vector<20x20xf32>
    %45 = arith.mulf %43, %44 : vector<20x20xf32>
    %46 = vector.extract_strided_slice %29 {offsets = [2, 0], sizes = [16, 20], strides = [1, 1]} : vector<20x20xf32> to vector<16x20xf32>
    %47 = vector.extract_strided_slice %29 {offsets = [1, 0], sizes = [16, 20], strides = [1, 1]} : vector<20x20xf32> to vector<16x20xf32>
    %cst_37 = arith.constant 2.000000e+00 : f32
    %48 = vector.broadcast %cst_37 : f32 to vector<16x20xf32>
    %49 = arith.mulf %48, %46 : vector<16x20xf32>
    %50 = arith.subf %47, %49 : vector<16x20xf32>
    %51 = vector.extract_strided_slice %29 {offsets = [3, 0], sizes = [16, 20], strides = [1, 1]} : vector<20x20xf32> to vector<16x20xf32>
    %52 = arith.addf %50, %51 : vector<16x20xf32>
    %53 = vector.extract_strided_slice %35 {offsets = [0, 0], sizes = [16, 20], strides = [1, 1]} : vector<20x20xf32> to vector<16x20xf32>
    %54 = vector.extract_strided_slice %35 {offsets = [2, 0], sizes = [16, 20], strides = [1, 1]} : vector<20x20xf32> to vector<16x20xf32>
    %cst_38 = arith.constant 2.000000e+00 : f32
    %55 = vector.broadcast %cst_38 : f32 to vector<16x20xf32>
    %56 = arith.mulf %55, %54 : vector<16x20xf32>
    %57 = arith.subf %53, %56 : vector<16x20xf32>
    %58 = vector.extract_strided_slice %35 {offsets = [4, 0], sizes = [16, 20], strides = [1, 1]} : vector<20x20xf32> to vector<16x20xf32>
    %59 = arith.addf %57, %58 : vector<16x20xf32>
    %60 = vector.extract_strided_slice %45 {offsets = [1, 0], sizes = [16, 20], strides = [1, 1]} : vector<20x20xf32> to vector<16x20xf32>
    %61 = arith.addf %59, %60 : vector<16x20xf32>
    %62 = vector.extract_strided_slice %45 {offsets = [2, 0], sizes = [16, 20], strides = [1, 1]} : vector<20x20xf32> to vector<16x20xf32>
    %cst_39 = arith.constant 2.000000e+00 : f32
    %63 = vector.broadcast %cst_39 : f32 to vector<16x20xf32>
    %64 = arith.mulf %63, %62 : vector<16x20xf32>
    %65 = arith.subf %61, %64 : vector<16x20xf32>
    %66 = vector.extract_strided_slice %45 {offsets = [3, 0], sizes = [16, 20], strides = [1, 1]} : vector<20x20xf32> to vector<16x20xf32>
    %67 = arith.addf %65, %66 : vector<16x20xf32>
    %cst_40 = arith.constant -2.000000e+00 : f32
    %68 = vector.broadcast %cst_40 : f32 to vector<16x20xf32>
    %69 = arith.mulf %68, %46 : vector<16x20xf32>
    %cst_41 = arith.constant -3.000000e+00 : f32
    %cst_42 = arith.constant 3.000000e+00 : f32
    %70 = vector.broadcast %cst_41 : f32 to vector<16x20xf32>
    %71 = arith.maximumf %70, %52 : vector<16x20xf32>
    %72 = vector.broadcast %cst_42 : f32 to vector<16x20xf32>
    %73 = arith.minimumf %72, %71 : vector<16x20xf32>
    %c0_43 = arith.constant 0 : index
    %c0_44 = arith.constant 0 : index
    %c0_45 = arith.constant 0 : index
    %c0_46 = arith.constant 0 : index
    %74 = vector.load %arg2[%c0_43, %c0_44, %c0_45, %c0_46] : memref<1x3x16x20xf32, #tpu.memory_space<vmem>>, vector<1x1x16x20xf32>
    %75 = vector.shape_cast %74 : vector<1x1x16x20xf32> to vector<16x20xf32>
    %76 = vector.shape_cast %73 : vector<16x20xf32> to vector<1x1x16x20xf32>
    tpu.vector_store %arg2[%c0_43, %c0_44, %c0_45, %c0_46], %76 {strides = array<i32>} : memref<1x3x16x20xf32, #tpu.memory_space<vmem>>, vector<1x1x16x20xf32>,
    %cst_47 = arith.constant -3.000000e+00 : f32
    %cst_48 = arith.constant 3.000000e+00 : f32
    %77 = vector.broadcast %cst_47 : f32 to vector<16x20xf32>
    %78 = arith.maximumf %77, %67 : vector<16x20xf32>
    %79 = vector.broadcast %cst_48 : f32 to vector<16x20xf32>
    %80 = arith.minimumf %79, %78 : vector<16x20xf32>
    %c0_49 = arith.constant 0 : index
    %c1_50 = arith.constant 1 : index
    %c0_51 = arith.constant 0 : index
    %c0_52 = arith.constant 0 : index
    %81 = vector.load %arg2[%c0_49, %c1_50, %c0_51, %c0_52] : memref<1x3x16x20xf32, #tpu.memory_space<vmem>>, vector<1x1x16x20xf32>
    %82 = vector.shape_cast %81 : vector<1x1x16x20xf32> to vector<16x20xf32>
    %83 = vector.shape_cast %80 : vector<16x20xf32> to vector<1x1x16x20xf32>
    tpu.vector_store %arg2[%c0_49, %c1_50, %c0_51, %c0_52], %83 {strides = array<i32>} : memref<1x3x16x20xf32, #tpu.memory_space<vmem>>, vector<1x1x16x20xf32>,
    %cst_53 = arith.constant -3.000000e+00 : f32
    %cst_54 = arith.constant 3.000000e+00 : f32
    %84 = vector.broadcast %cst_53 : f32 to vector<16x20xf32>
    %85 = arith.maximumf %84, %69 : vector<16x20xf32>
    %86 = vector.broadcast %cst_54 : f32 to vector<16x20xf32>
    %87 = arith.minimumf %86, %85 : vector<16x20xf32>
    %c0_55 = arith.constant 0 : index
    %c2_56 = arith.constant 2 : index
    %c0_57 = arith.constant 0 : index
    %c0_58 = arith.constant 0 : index
    %88 = vector.load %arg2[%c0_55, %c2_56, %c0_57, %c0_58] : memref<1x3x16x20xf32, #tpu.memory_space<vmem>>, vector<1x1x16x20xf32>
    %89 = vector.shape_cast %88 : vector<1x1x16x20xf32> to vector<16x20xf32>
    %90 = vector.shape_cast %87 : vector<16x20xf32> to vector<1x1x16x20xf32>
    tpu.vector_store %arg2[%c0_55, %c2_56, %c0_57, %c0_58], %90 {strides = array<i32>} : memref<1x3x16x20xf32, #tpu.memory_space<vmem>>, vector<1x1x16x20xf32>,
    return
  }
  func.func @transform_0(%arg0: i32) -> (i32, i32, i32, i32) {
    %c0_i32 = arith.constant 0 : i32
    %c0_i32_0 = arith.constant 0 : i32
    %c0_i32_1 = arith.constant 0 : i32
    %c0_i32_2 = arith.constant 0 : i32
    return %arg0, %c0_i32, %c0_i32_0, %c0_i32_1 : i32, i32, i32, i32
  }
  func.func @transform_1(%arg0: i32) -> (i32, i32, i32, i32) {
    %c0_i32 = arith.constant 0 : i32
    %c0_i32_0 = arith.constant 0 : i32
    %c0_i32_1 = arith.constant 0 : i32
    %c0_i32_2 = arith.constant 0 : i32
    return %arg0, %c0_i32, %c0_i32_0, %c0_i32_1 : i32, i32, i32, i32
  }
}

</mosaic_0001>

<llo_original>
// kernel: tpu_custom_call.1
$region0: #{tpu_custom_call.1}
  #allocation0 [shape = 'u32[]', space=smem, size = 0x4, offset = 0x4, fixed_abs, tag = 'smem constant byte address 0x4 - core index']
  #allocation1 [shape = 'u32[72,128]{1,0:T(1,128)}', space=vmem, size = 0x9000, scoped, tag = 'internal scratch']
  #allocation2 [shape = 'f32[20,24]{1,0:T(8,128)}', space=vmem, size = 0x3000, scoped, tag = 'scratch operand']
  %s0 = inlined_call_operand.hbm [shape: f32[2,3,16,16], index: 0, kind: input, shape index: {}]
  %s1 = inlined_call_operand.hbm [shape: f32[2,3,16,20], index: 1, kind: output, shape index: {}]
  %s2 = sld [smem:[#allocation0]]
  $region41: #{tpu_custom_call.1} parent=0
    _
  %s4 = ssub.s32 1, %s2
  %s5 = scalar_select 0, %s4, %s2
  $region1: #{tpu_custom_call.1} parent=0
    #allocation3 [shape = 'u8[49152]{0}', space=vmem, size = 0xc000, scoped, tag = 'input window, operand 0']
    #allocation4 [shape = 's32[2]{0}', space=sflag, size = 0x8, scoped, tag = 'scoped memory for tpu_custom_call.1']
    #allocation5 [shape = 's32[2]{0}', space=sflag, size = 0x8, scoped, tag = 'scoped memory for tpu_custom_call.1']
    #allocation6 [shape = 'u8[49152]{0}', space=vmem, size = 0xc000, scoped, tag = 'output window, operand 0']
    %6 = vsyncpa [#allocation4], 0
    %s7 = scalar_lea.sflag [#allocation4], 1
    %8 = vsyncpa %s7, 0
    %9 = vsyncpa [#allocation5], 0
    %s10 = scalar_lea.sflag [#allocation5], 1
    %11 = vsyncpa %s10, 0
    loop: start=0, step=1, limit=4
    $region2: #{tpu_custom_call.1} parent=1 // loop_pre_header
      _
    $region3: #{tpu_custom_call.1} parent=1 // loop_header
      %s13 = sphi 0, %s17
      %p14 = scmp.ge.s32.totalorder %s13, 4
      %s23 = sphi 0, %s25
      %s26 = sphi 0, %s23
      %s27 = sphi 0, %s26
      %s43 = sphi 0, %s27
      %s49 = sphi 0, %s51
      %s52 = sphi 0, %s49
      %s53 = sphi 0, %s52
      %s69 = sphi 0, %s53
    $region4: #{tpu_custom_call.1} parent=1 // loop_header_branch
      %16 = sbr.rel (%p14) target = $region8
    $region5: #{tpu_custom_call.1} parent=1 // loop_body
      %s18 = ssub.s32 %s13, 1
      %s19 = ssub.s32 %s13, 2
      %s20 = sadd.s32 %s13, 1
      %s21 = ssub.s32 %s13, %s20
      %p22 = scmp.eq.s32.totalorder %s21, 0
      %s24 = sadd.s32 %s23, 1
      %s25 = scalar_select %p22, %s23, %s24
      %p28 = pneg %p22
      %p29 = scmp.eq.s32.totalorder %s13, 1
      %p30 = por %p28, %p29
      %p31 = scmp.ne.s32.totalorder %s23, %s26
      %p32 = scmp.eq.s32.totalorder %s13, 0
      %p33 = por %p31, %p32
      %p34 = scmp.ne.s32.totalorder %s23, %s26
      %p35 = scmp.eq.s32.totalorder %s18, 1
      %p36 = por %p34, %p35
      %p37 = scmp.ne.s32.totalorder %s26, %s27
      %p38 = scmp.eq.s32.totalorder %s18, 0
      %p39 = por %p37, %p38
      %p40 = scmp.ne.s32.totalorder %s26, %s27
      %p41 = scmp.eq.s32.totalorder %s19, 1
      %p42 = por %p40, %p41
      %p44 = scmp.ne.s32.totalorder %s27, %s43
      %p45 = scmp.eq.s32.totalorder %s19, 0
      %p46 = por %p44, %p45
      %s47 = ssub.s32 %s13, %s20
      %p48 = scmp.eq.s32.totalorder %s47, 0
      %s50 = sadd.s32 %s49, 1
      %s51 = scalar_select %p48, %s49, %s50
      %p54 = pneg %p48
      %p55 = scmp.eq.s32.totalorder %s13, 1
      %p56 = por %p54, %p55
      %p57 = scmp.ne.s32.totalorder %s49, %s52
      %p58 = scmp.eq.s32.totalorder %s13, 0
      %p59 = por %p57, %p58
      %p60 = scmp.ne.s32.totalorder %s49, %s52
      %p61 = scmp.eq.s32.totalorder %s18, 1
      %p62 = por %p60, %p61
      %p63 = scmp.ne.s32.totalorder %s52, %s53
      %p64 = scmp.eq.s32.totalorder %s18, 0
      %p65 = por %p63, %p64
      %p66 = scmp.ne.s32.totalorder %s52, %s53
      %p67 = scmp.eq.s32.totalorder %s19, 1
      %p68 = por %p66, %p67
      %p70 = scmp.ne.s32.totalorder %s53, %s69
      %p71 = scmp.eq.s32.totalorder %s19, 0
      %p72 = por %p70, %p71
      %p73 = scmp.le.s32.totalorder 1, %s13
      %p74 = scmp.lt.s32.totalorder %s13, 3
      %p75 = pnand %p73, %p74
      %p76 = pneg %p75
      // Predicated region
      $region9: #{tpu_custom_call.1} parent=5 // pred_check
        _
      $region10: #{tpu_custom_call.1} parent=5 // pred_check_branch
        %78 = sbr.rel (%p75) target = $region12
      $region11: #{tpu_custom_call.1} parent=5 // pred_region
        %s79 = ssub.s32 %s13, 1
      $region12: #{tpu_custom_call.1} parent=5 // pred_fallthru
        _
      %p80 = scmp.lt.s32.totalorder %s13, 2
      // Predicated region
      $region13: #{tpu_custom_call.1} parent=5 // pred_check
        %p81 = pneg %p80
      $region14: #{tpu_custom_call.1} parent=5 // pred_check_branch
        %83 = sbr.rel (%p81) target = $region16
      $region15: #{tpu_custom_call.1} parent=5 // pred_region
        // Predicated region
        $region17: #{tpu_custom_call.1} parent=15 // pred_check
          %p84 = pneg %p33
        $region18: #{tpu_custom_call.1} parent=15 // pred_check_branch
          %86 = sbr.rel (%p84) target = $region20
        $region19: #{tpu_custom_call.1} parent=15 // pred_region
          %s87 = sand.u32 %s23, 1
          %s88 = scalar_lea.sflag [#allocation4], %s87
          %s89 = sand.u32 %s23, 1
          %s90 = smul.addr %s89, 48
          %s91 = scalar_lea.vmem [#allocation3], %s90
          %93 = vsyncadd %s88, 0
          %s94 = smul.addr %s13, 6
          %s95 = smul.addr %s94, 8
          %s96 = scalar_lea.hbm %s0, %s95
          %s97 = sshll.u32 %s96, 4
          %s98 = int_to_ptr.hbm [resolvable:$true] %s97
          %s99 = sshll.u32 %s91, 4
          %s100 = int_to_ptr.vmem [resolvable:$true] %s99
          %105 = dma.hbm_to_vmem [thread:$0]  %s98, 768, %s100, %s88, 128, 128, 8
        $region20: #{tpu_custom_call.1} parent=15 // pred_fallthru
          _
      $region16: #{tpu_custom_call.1} parent=5 // pred_fallthru
        _
      %p106 = scmp.le.s32.totalorder 1, %s13
      %p107 = scmp.lt.s32.totalorder %s13, 3
      %p108 = pnand %p106, %p107
      %p109 = pneg %p108
      // Predicated region
      $region21: #{tpu_custom_call.1} parent=5 // pred_check
        _
      $region22: #{tpu_custom_call.1} parent=5 // pred_check_branch
        %111 = sbr.rel (%p108) target = $region24
      $region23: #{tpu_custom_call.1} parent=5 // pred_region
        %s112 = ssub.s32 %s13, 1
        %s113 = sand.u32 %s26, 1
        %s114 = scalar_lea.sflag [#allocation4], %s113
        %s115 = sand.u32 %s26, 1
        %s116 = smul.addr %s115, 48
        %s117 = scalar_lea.vmem [#allocation3], %s116
        // Predicated region
        $region25: #{tpu_custom_call.1} parent=23 // pred_check
          %p118 = pneg %p39
        $region26: #{tpu_custom_call.1} parent=23 // pred_check_branch
          %120 = sbr.rel (%p118) target = $region28
        $region27: #{tpu_custom_call.1} parent=23 // pred_region
          %122 = dma.done %s114, 768
        $region28: #{tpu_custom_call.1} parent=23 // pred_fallthru
          _
        %s123 = sand.u32 %s26, 1
        %s124 = scalar_lea.sflag [#allocation4], %s123
        %s125 = sand.u32 %s26, 1
        %s126 = smul.addr %s125, 48
        %s127 = scalar_lea.vmem [#allocation3], %s126
        %p128 = pneg %p39
        %p129 = pneg %p36
        %p130 = pneg %p65
        %p131 = pneg %p62
        %s132 = sand.u32 %s52, 1
        %s133 = scalar_lea.sflag [#allocation5], %s132
        %s134 = sand.u32 %s52, 1
        %s135 = smul.addr %s134, 48
        %s136 = scalar_lea.vmem [#allocation6], %s135
        %v137 = vld [vmem:[%s117] sm:$0xff]
        %v138 = vld [vmem:[%s117 + $0x8] sm:$0xff]
        %s139 = scalar_lea.vmem %s117, 16 [#allocation3]
        %v140 = vld [vmem:[%s139] sm:$0xff]
        %v141 = vld [vmem:[%s139 + $0x8] sm:$0xff]
        %v142 = vadd.f32 %v137, %v140
        %v143 = vadd.f32 %v138, %v141
        %s144 = scalar_lea.vmem %s117, 32 [#allocation3]
        %v145 = vld [vmem:[%s144] sm:$0xff]
        %v146 = vld [vmem:[%s144 + $0x8] sm:$0xff]
        %v147 = vadd.f32 %v142, %v145
        %v148 = vadd.f32 %v143, %v146
        %vm149 = vcmask 189440
        %150 = vst.msk [vmem:[#allocation2] sm:$0x3] %vm149, 0.0
        %151 = vst.msk [vmem:[#allocation2 + $0x12] sm:$0x3] %vm149, 0.0
        %vm152 = vcmask 195744
        %153 = vst.msk [vmem:[#allocation2 + $0x2] sm:$0xff] %vm152, 0.0
        %154 = vst.msk [vmem:[#allocation2 + $0xa] sm:$0xff] %vm152, 0.0
        %vm155 = vcmask 15360
        %156 = vst.msk [vmem:[#allocation2 + $0x2] sm:$0xff] %vm155, 0.0
        %157 = vst.msk [vmem:[#allocation2 + $0xa] sm:$0xff] %vm155, 0.0
        %160 = vrot.lane.b32.xlu0 %v147, 2
        %v161 = vpop.permute.xlu0 %160
        %162 = vrot.lane.b32.xlu0 %v148, 2
        %v163 = vpop.permute.xlu0 %162
        %vm166 = vcmask 146448
        %167 = vst.msk [vmem:[#allocation2 + $0x2] sm:$0xff] %vm166, %v161
        %168 = vst.msk [vmem:[#allocation2 + $0xa] sm:$0xff] %vm166, %v163
        %vm169 = vcmask 162960
        %170 = vst.msk [vmem:[#allocation2 + $0x2] sm:$0xff] %vm169, 0.0
        %171 = vst.msk [vmem:[#allocation2 + $0xa] sm:$0xff] %vm169, 0.0
        %v172 = vld [vmem:[#allocation2] sm:$0xff]
        %v173 = vld [vmem:[#allocation2 + $0x8] sm:$0xff]
        %v174 = vld [vmem:[#allocation2 + $0x10] sm:$0xf]
        %178 = vrot.lane.b32.xlu0 %v172, 124
        %v179 = vpop.permute.xlu0 %178
        %180 = vrot.lane.b32.xlu0 %v173, 124
        %v181 = vpop.permute.xlu0 %180
        %182 = vrot.lane.b32.xlu0 %v174, 124
        %v183 = vpop.permute.xlu0 %182
        %v187 = vadd.f32 %v172, %v179
        %v188 = vadd.f32 %v173, %v181
        %v189 = vadd.f32 %v174, %v183
        %190 = vrot.lane.b32.xlu0 %v172, 126
        %v191 = vpop.permute.xlu0 %190
        %192 = vrot.lane.b32.xlu0 %v173, 126
        %v193 = vpop.permute.xlu0 %192
        %194 = vrot.lane.b32.xlu0 %v174, 126
        %v195 = vpop.permute.xlu0 %194
        %v199 = vadd.f32 %v172, %v191
        %v200 = vadd.f32 %v173, %v193
        %v201 = vadd.f32 %v174, %v195
        %v202 = vmul.f32 %v172, 0.5
        %v203 = vmul.f32 %v173, 0.5
        %v204 = vmul.f32 %v174, 0.5
        %v205 = vmul.f32 %v199, 0.25
        %v206 = vmul.f32 %v200, 0.25
        %v207 = vmul.f32 %v201, 0.25
        %211 = vrot.lane.b32.xlu0 %v205, 1
        %v212 = vpop.permute.xlu0 %211
        %213 = vrot.lane.b32.xlu0 %v206, 1
        %v214 = vpop.permute.xlu0 %213
        %215 = vrot.lane.b32.xlu0 %v207, 1
        %v216 = vpop.permute.xlu0 %215
        %v220 = vsub.f32 %v202, %v212
        %v221 = vsub.f32 %v203, %v214
        %v222 = vsub.f32 %v204, %v216
        %223 = vrot.lane.b32.xlu0 %v172, 127
        %v224 = vpop.permute.xlu0 %223
        %225 = vrot.lane.b32.xlu0 %v173, 127
        %v226 = vpop.permute.xlu0 %225
        %227 = vrot.lane.b32.xlu0 %v174, 127
        %v228 = vpop.permute.xlu0 %227
        %v232 = vsub.f32 %v199, %v224
        %v233 = vsub.f32 %v200, %v226
        %v234 = vsub.f32 %v201, %v228
        %v235 = vmul.f32 %v232, 2.0
        %v236 = vmul.f32 %v233, 2.0
        %v237 = vmul.f32 %v234, 2.0
        %241 = vrot.lane.b32.xlu0 %v187, 1
        %v242 = vpop.permute.xlu0 %241
        %243 = vrot.lane.b32.xlu0 %v188, 1
        %v244 = vpop.permute.xlu0 %243
        %245 = vrot.lane.b32.xlu0 %v189, 1
        %v246 = vpop.permute.xlu0 %245
        %v250 = vsub.f32 %v235, %v242
        %v251 = vsub.f32 %v236, %v244
        %v252 = vsub.f32 %v237, %v246
        %v253 = vmul.f32 %v250, 0.083333336
        %v254 = vmul.f32 %v251, 0.083333336
        %v255 = vmul.f32 %v252, 0.083333336
        %v256 = vmul.f32 %v172, 8.0
        %v257 = vmul.f32 %v173, 8.0
        %v258 = vmul.f32 %v174, 8.0
        %v259 = vmul.f32 %v199, 6.0
        %v260 = vmul.f32 %v200, 6.0
        %v261 = vmul.f32 %v201, 6.0
        %265 = vrot.lane.b32.xlu0 %v259, 1
        %v266 = vpop.permute.xlu0 %265
        %267 = vrot.lane.b32.xlu0 %v260, 1
        %v268 = vpop.permute.xlu0 %267
        %269 = vrot.lane.b32.xlu0 %v261, 1
        %v270 = vpop.permute.xlu0 %269
        %v274 = vsub.f32 %v256, %v266
        %v275 = vsub.f32 %v257, %v268
        %v276 = vsub.f32 %v258, %v270
        %v277 = vmul.f32 %v187, 2.0
        %v278 = vmul.f32 %v188, 2.0
        %v279 = vmul.f32 %v189, 2.0
        %283 = vrot.lane.b32.xlu0 %v277, 2
        %v284 = vpop.permute.xlu0 %283
        %285 = vrot.lane.b32.xlu0 %v278, 2
        %v286 = vpop.permute.xlu0 %285
        %287 = vrot.lane.b32.xlu0 %v279, 2
        %v288 = vpop.permute.xlu0 %287
        %v292 = vadd.f32 %v274, %v284
        %v293 = vadd.f32 %v275, %v286
        %v294 = vadd.f32 %v276, %v288
        %v295 = vmul.f32 %v292, 0.083333336
        %v296 = vmul.f32 %v293, 0.083333336
        %v297 = vmul.f32 %v294, 0.083333336
        %v298 = vmul.f32 %v220, 2.0
        %v299 = vmul.f32 %v221, 2.0
        %v300 = vmul.f32 %v222, 2.0
        %vm304 = vcmask 1046528
        %v305 = vrot.slane %v298, 1
        %v306 = vrot.slane %v299, 1
        %v307 = vsel %vm304, %v305, %v306
        %v308 = vrot.slane %v300, 1
        %v309 = vsel %vm304, %v306, %v308
        %v313 = vsub.f32 %v220, %v307
        %v314 = vsub.f32 %v221, %v309
        %v315 = vsub.f32 %v222, %v308
        %vm319 = vcmask 1045504
        %v320 = vrot.slane %v220, 2
        %v321 = vrot.slane %v221, 2
        %v322 = vsel %vm319, %v320, %v321
        %v323 = vrot.slane %v222, 2
        %v324 = vsel %vm319, %v321, %v323
        %v328 = vadd.f32 %v313, %v322
        %v329 = vadd.f32 %v314, %v324
        %v330 = vadd.f32 %v315, %v323
        %v331 = vmul.f32 %v253, 2.0
        %v332 = vmul.f32 %v254, 2.0
        %v333 = vmul.f32 %v255, 2.0
        %v337 = vrot.slane %v331, 2
        %v338 = vrot.slane %v332, 2
        %v339 = vsel %vm319, %v337, %v338
        %v340 = vrot.slane %v333, 2
        %v341 = vsel %vm319, %v338, %v340
        %v344 = vsub.f32 %v253, %v339
        %v345 = vsub.f32 %v254, %v341
        %vm349 = vcmask 1043456
        %v350 = vrot.slane %v253, 4
        %v351 = vrot.slane %v254, 4
        %v352 = vsel %vm349, %v350, %v351
        %v353 = vrot.slane %v255, 4
        %v354 = vsel %vm349, %v351, %v353
        %v357 = vadd.f32 %v344, %v352
        %v358 = vadd.f32 %v345, %v354
        %v362 = vrot.slane %v295, 1
        %v363 = vrot.slane %v296, 1
        %v364 = vsel %vm304, %v362, %v363
        %v365 = vrot.slane %v297, 1
        %v366 = vsel %vm304, %v363, %v365
        %367 = vrot.lane.b32.xlu0 %v364, 127
        %v368 = vpop.permute.xlu0 %367
        %369 = vrot.lane.b32.xlu0 %v366, 127
        %v370 = vpop.permute.xlu0 %369
        %v373 = vadd.f32 %v357, %v368
        %v374 = vadd.f32 %v358, %v370
        %v375 = vmul.f32 %v295, 2.0
        %v376 = vmul.f32 %v296, 2.0
        %v377 = vmul.f32 %v297, 2.0
        %v381 = vrot.slane %v375, 2
        %v382 = vrot.slane %v376, 2
        %v383 = vsel %vm319, %v381, %v382
        %v384 = vrot.slane %v377, 2
        %v385 = vsel %vm319, %v382, %v384
        %386 = vrot.lane.b32.xlu0 %v383, 127
        %v387 = vpop.permute.xlu0 %386
        %388 = vrot.lane.b32.xlu0 %v385, 127
        %v389 = vpop.permute.xlu0 %388
        %v392 = vsub.f32 %v373, %v387
        %v393 = vsub.f32 %v374, %v389
        %vm394 = vcmask 1044480
        %v395 = vrot.slane %v295, 3
        %v396 = vrot.slane %v296, 3
        %v397 = vsel %vm394, %v395, %v396
        %v398 = vrot.slane %v297, 3
        %v399 = vsel %vm394, %v396, %v398
        %400 = vrot.lane.b32.xlu0 %v397, 127
        %v401 = vpop.permute.xlu0 %400
        %402 = vrot.lane.b32.xlu0 %v399, 127
        %v403 = vpop.permute.xlu0 %402
        %v406 = vadd.f32 %v392, %v401
        %v407 = vadd.f32 %v393, %v403
        %v408 = vmul.f32 %v220, -2.0
        %v409 = vmul.f32 %v221, -2.0
        %v410 = vmul.f32 %v222, -2.0
        %v411 = vmax.f32 %v328, -3.0
        %v412 = vmax.f32 %v329, -3.0
        %v413 = vmax.f32 %v330, -3.0
        %v414 = vmin.f32 %v411, 3.0
        %v415 = vmin.f32 %v412, 3.0
        %v416 = vmin.f32 %v413, 3.0
        %420 = vrot.lane.b32.xlu0 %v414, 126
        %v421 = vpop.permute.xlu0 %420
        %422 = vrot.lane.b32.xlu0 %v415, 126
        %v423 = vpop.permute.xlu0 %422
        %424 = vrot.lane.b32.xlu0 %v416, 126
        %v425 = vpop.permute.xlu0 %424
        %vm429 = vcmask 162817
        %430 = vst.msk [vmem:[%s136 - $0x1] sm:$0xfe] %vm429, %v421
        %vm431 = vcmask 162816
        %432 = vst.msk [vmem:[%s136 + $0x7] sm:$0xff] %vm431, %v423
        %vm433 = vcmask 155648
        %434 = vst.msk [vmem:[%s136 + $0xf] sm:$0x1] %vm433, %v425
        %v435 = vmax.f32 %v406, -3.0
        %v436 = vmax.f32 %v407, -3.0
        %v437 = vmin.f32 %v435, 3.0
        %v438 = vmin.f32 %v436, 3.0
        %441 = vrot.lane.b32.xlu0 %v437, 127
        %v442 = vpop.permute.xlu0 %441
        %443 = vrot.lane.b32.xlu0 %v438, 127
        %v444 = vpop.permute.xlu0 %443
        %s447 = scalar_lea.vmem %s136, 16 [#allocation6]
        %448 = vst.msk [vmem:[%s447] sm:$0xff] %vm431, %v442
        %449 = vst.msk [vmem:[%s447 + $0x8] sm:$0xff] %vm431, %v444
        %v450 = vmax.f32 %v408, -3.0
        %v451 = vmax.f32 %v409, -3.0
        %v452 = vmax.f32 %v410, -3.0
        %v453 = vmin.f32 %v450, 3.0
        %v454 = vmin.f32 %v451, 3.0
        %v455 = vmin.f32 %v452, 3.0
        %459 = vrot.lane.b32.xlu0 %v453, 126
        %v460 = vpop.permute.xlu0 %459
        %461 = vrot.lane.b32.xlu0 %v454, 126
        %v462 = vpop.permute.xlu0 %461
        %463 = vrot.lane.b32.xlu0 %v455, 126
        %v464 = vpop.permute.xlu0 %463
        %s468 = scalar_lea.vmem %s136, 32 [#allocation6]
        %vm469 = vcmask 162818
        %470 = vst.msk [vmem:[%s468 - $0x2] sm:$0xfc] %vm469, %v460
        %471 = vst.msk [vmem:[%s468 + $0x6] sm:$0xff] %vm431, %v462
        %vm472 = vcmask 156672
        %473 = vst.msk [vmem:[%s468 + $0xe] sm:$0x3] %vm472, %v464
        %s474 = sand.u32 %s52, 1
        %s475 = scalar_lea.sflag [#allocation5], %s474
        %s476 = sand.u32 %s52, 1
        %s477 = smul.addr %s476, 48
        %s478 = scalar_lea.vmem [#allocation6], %s477
        // Predicated region
        $region29: #{tpu_custom_call.1} parent=23 // pred_check
          %p479 = pneg %p62
        $region30: #{tpu_custom_call.1} parent=23 // pred_check_branch
          %481 = sbr.rel (%p479) target = $region32
        $region31: #{tpu_custom_call.1} parent=23 // pred_region
          %483 = vsyncadd %s475, 0
          %s484 = smul.addr %s18, 6
          %s485 = smul.addr %s484, 8
          %s486 = scalar_lea.hbm %s1, %s485
          %s487 = sshll.u32 %s478, 4
          %s488 = int_to_ptr.vmem [resolvable:$true] %s487
          %s489 = sshll.u32 %s486, 4
          %s490 = int_to_ptr.hbm [resolvable:$true] %s489
          %495 = dma.vmem_to_hbm [thread:$0]  %s488, 768, %s490, %s475, 128, 128, 8
        $region32: #{tpu_custom_call.1} parent=23 // pred_fallthru
          _
      $region24: #{tpu_custom_call.1} parent=5 // pred_fallthru
        _
      %p496 = scmp.le.s32.totalorder 2, %s13
      // Predicated region
      $region33: #{tpu_custom_call.1} parent=5 // pred_check
        %p497 = pneg %p496
      $region34: #{tpu_custom_call.1} parent=5 // pred_check_branch
        %499 = sbr.rel (%p497) target = $region36
      $region35: #{tpu_custom_call.1} parent=5 // pred_region
        %s500 = ssub.s32 %s13, 2
        // Predicated region
        $region37: #{tpu_custom_call.1} parent=35 // pred_check
          %p501 = pneg %p68
        $region38: #{tpu_custom_call.1} parent=35 // pred_check_branch
          %503 = sbr.rel (%p501) target = $region40
        $region39: #{tpu_custom_call.1} parent=35 // pred_region
          %s504 = sand.u32 %s53, 1
          %s505 = scalar_lea.sflag [#allocation5], %s504
          %s506 = sand.u32 %s53, 1
          %s507 = smul.addr %s506, 48
          %s508 = scalar_lea.vmem [#allocation6], %s507
          %510 = dma.done %s505, 768
        $region40: #{tpu_custom_call.1} parent=35 // pred_fallthru
          _
      $region36: #{tpu_custom_call.1} parent=5 // pred_fallthru
        _
    $region6: #{tpu_custom_call.1} parent=1 // loop_footer
      %s17 = sadd.s32 1, %s13
    $region7: #{tpu_custom_call.1} parent=1 // loop_footer_branch
      %12 = sbr.rel target = $region3
    $region8: #{tpu_custom_call.1} parent=1 // loop_exit
      _
    %511 = vsyncpa [#allocation4], 1
    %s512 = scalar_lea.sflag [#allocation4], 1
    %513 = vsyncpa %s512, 1
    %514 = vsyncpa [#allocation5], 1
    %s515 = scalar_lea.sflag [#allocation5], 1
    %516 = vsyncpa %s515, 1

</llo_original>
